<compile_context>
chip_gen: v7x
topology: tpu7x:2x2x1
jax: 0.10.0
libtpu: 0.0.40
codegen_flags: <defaults>
</compile_context>

<pallas_src>
import functools

import jax
import jax.numpy as jnp
from jax import lax
from jax.experimental import pallas as pl
from jax.experimental.pallas import tpu as pltpu


_LANE = 128
_SINGLE_BLOCK_BYTES = 4 << 20     # (C, HW) slabs up to this -> single-shot path
_TILE_TARGET_BYTES = 12 << 20     # per-buffer target for the streaming path


def _round_up(a, b):
    return -(-a // b) * b


def _vmem_capacity_bytes(default=64 << 20):
    """Physical VMEM of the current chip (64 MiB on v7x, 128 MiB on v5e/v6e)."""
    try:
        info = pltpu.get_tpu_info()
        for attr in ("vmem_capacity_bytes", "vmem_bytes", "vmem_size_bytes"):
            v = getattr(info, attr, None)
            if isinstance(v, int) and v > 0:
                return int(v)
    except Exception:
        pass
    return default


def _fc_sigmoid(avg, mxv, w1, w2):
    """avg, mxv: (C, 1) f32.  w1: (Cr, C), w2: (C, Cr).

    Returns sigmoid(fc(avg) + fc(max)) as (C, 1), using
    w2 @ (relu(w1@avg) + relu(w1@max)) which is exactly fc(avg)+fc(max).
    """
    h = (jnp.maximum(jnp.dot(w1, avg, preferred_element_type=jnp.float32), 0.0)
         + jnp.maximum(jnp.dot(w1, mxv, preferred_element_type=jnp.float32), 0.0))  # (Cr, 1)
    y = jnp.dot(w2, h, preferred_element_type=jnp.float32)                           # (C, 1)
    return jax.nn.sigmoid(y)


# --------------------------------------------------------------------------
# Path 1: single-block kernel (whole (C, HW) slab in one grid step).
# --------------------------------------------------------------------------
def _single_block_kernel(x_ref, w1_ref, w2_ref, o_ref, *, hw):
    x = x_ref[0].astype(jnp.float32)                                   # (C, HW)
    avg = jnp.sum(x, axis=-1, keepdims=True) * (1.0 / hw)              # (C, 1)
    mxv = jnp.max(x, axis=-1, keepdims=True)                           # (C, 1)
    out = _fc_sigmoid(avg, mxv, w1_ref[...], w2_ref[...])              # (C, 1)
    o_ref[...] = out.reshape(o_ref.shape)


# --------------------------------------------------------------------------
# Path 2: tiled / streaming kernel with lane-partial accumulators.
# --------------------------------------------------------------------------
def _accumulate_tile(x_ref, sum_ref, max_ref, n_valid):
    """Accumulate the first `n_valid` (static) lanes of the current (1, C, t_hw)
    tile into lane-partial (C, 128) sum/max buffers.

    Full 128-lane chunks use a mask-free pure-VALU path; only the final
    ragged chunk (if any) pays the iota + select masking.
    """
    s = sum_ref[...]
    m = max_ref[...]
    full = n_valid // _LANE
    tail = n_valid % _LANE

    if 0 < full <= 32:
        # Short fixed trip-count: static unroll for LLO scheduling.
        for j in range(full):
            c = x_ref[0, :, j * _LANE:(j + 1) * _LANE].astype(jnp.float32)
            s = s + c
            m = jnp.maximum(m, c)
    elif full > 32:
        def body(j, carry):
            s_c, m_c = carry
            off = pl.multiple_of(j * _LANE, _LANE)
            c = x_ref[0, :, pl.ds(off, _LANE)].astype(jnp.float32)
            return s_c + c, jnp.maximum(m_c, c)

        s, m = lax.fori_loop(0, full, body, (s, m), unroll=8)

    if tail:
        c = x_ref[0, :, full * _LANE:(full + 1) * _LANE].astype(jnp.float32)
        lane = lax.broadcasted_iota(jnp.int32, c.shape, 1)
        ok = lane < tail
        s = s + jnp.where(ok, c, 0.0)
        m = jnp.maximum(m, jnp.where(ok, c, -jnp.inf))

    sum_ref[...] = s
    max_ref[...] = m


def _tiled_kernel(x_ref, w1_ref, w2_ref, o_ref, sum_ref, max_ref, *, hw, t_hw):
    k = pl.program_id(1)
    nk = pl.num_programs(1)

    @pl.when(k == 0)
    def _():
        sum_ref[...] = jnp.zeros_like(sum_ref)
        max_ref[...] = jnp.full_like(max_ref, -jnp.inf)

    rem = hw % t_hw                     # static Python int
    if rem == 0:
        # Every tile is full: single unmasked path, no runtime branch at all.
        _accumulate_tile(x_ref, sum_ref, max_ref, t_hw)
    else:
        @pl.when(k < nk - 1)
        def _():
            _accumulate_tile(x_ref, sum_ref, max_ref, t_hw)

        @pl.when(k == nk - 1)
        def _():
            _accumulate_tile(x_ref, sum_ref, max_ref, rem)

    @pl.when(k == nk - 1)
    def _():
        # One XLU lane-reduce + tiny FC, once per batch element.
        avg = jnp.sum(sum_ref[...], axis=-1, keepdims=True) * (1.0 / hw)   # (C, 1)
        mxv = jnp.max(max_ref[...], axis=-1, keepdims=True)                # (C, 1)
        out = _fc_sigmoid(avg, mxv, w1_ref[...], w2_ref[...])
        o_ref[...] = out.reshape(o_ref.shape)


# --------------------------------------------------------------------------
# Wrapper
# --------------------------------------------------------------------------
def channel_attention(x, w1, w2, *, t_hw=None):
    """CBAM channel attention.

    x:  (N, C, H, W) NCHW, any float dtype (kept native on the HBM->VMEM path).
    w1: (C//r, C)  conv1 1x1 weight (trivial spatial dims squeezed).
    w2: (C, C//r)  conv2 1x1 weight.
    t_hw: optional forced lane tile over the flattened spatial axis
          (multiple of 128, or >= H*W to force the single-block path).
    Returns (N, C, 1, 1) in x.dtype.
    """
    N, C, H, W = x.shape
    Cr = w1.shape[0]
    assert w1.shape == (Cr, C) and w2.shape == (C, Cr)
    HW = H * W
    itemsize = jnp.dtype(x.dtype).itemsize

    xf = x.reshape(N, C, HW)                 # native dtype, no f32 copy in HBM
    w1f = w1.astype(jnp.float32)
    w2f = w2.astype(jnp.float32)

    vmem_cap = _vmem_capacity_bytes()
    per_buf_budget = min(vmem_cap // 4, _TILE_TARGET_BYTES)
    slab_bytes = C * HW * itemsize

    # ---- choose path + tile size ----
    if t_hw is None:
        if slab_bytes <= _SINGLE_BLOCK_BYTES:
            t_hw = HW                                              # single-shot
        else:
            lanes = max(_LANE, (per_buf_budget // (C * itemsize)) // _LANE * _LANE)
            # Keep >= 2 k-steps so the only block never exceeds the array extent.
            lanes = min(lanes, _round_up(-(-HW // 2), _LANE))
            t_hw = lanes
            # Prefer a tile that divides HW so the masked-tail path is never traced.
            if HW % lanes != 0:
                lo = max(_LANE, (lanes * 3 // 4) // _LANE * _LANE)
                for cand in range(lanes, lo - _LANE, -_LANE):
                    if HW % cand == 0:
                        t_hw = cand
                        break
            if t_hw >= HW:                    # tiny-HW / huge-C edge case
                t_hw = HW

    cost = pl.CostEstimate(
        flops=N * (2 * HW * C + 3 * 2 * C * Cr),
        transcendentals=N * C,
        bytes_accessed=N * C * HW * itemsize + 2 * C * Cr * 4 + N * C * 4,
    )

    if t_hw >= HW:
        # ---------------- single-block path: grid over batch only ----------------
        tile_bytes = C * HW * itemsize
        vmem_limit = int(min(4 * tile_bytes + (16 << 20), vmem_cap))
        kernel = functools.partial(_single_block_kernel, hw=HW)
        out = pl.pallas_call(
            kernel,
            out_shape=jax.ShapeDtypeStruct((N, C, 1), jnp.float32),
            grid_spec=pltpu.PrefetchScalarGridSpec(
                num_scalar_prefetch=0,
                grid=(N,),
                in_specs=[
                    pl.BlockSpec((1, C, HW), lambda n: (n, 0, 0)),
                    pl.BlockSpec((Cr, C), lambda n: (0, 0)),
                    pl.BlockSpec((C, Cr), lambda n: (0, 0)),
                ],
                out_specs=pl.BlockSpec((1, C, 1), lambda n: (n, 0, 0)),
            ),
            compiler_params=pltpu.CompilerParams(
                dimension_semantics=("parallel",),
                vmem_limit_bytes=vmem_limit,
            ),
            cost_estimate=cost,
        )(xf, w1f, w2f)
    else:
        # ---------------- tiled / streaming path ----------------
        assert t_hw % _LANE == 0, "t_hw must be a multiple of 128 on the tiled path"
        num_k = -(-HW // t_hw)
        tile_bytes = C * t_hw * itemsize
        vmem_limit = int(min(2 * tile_bytes + (16 << 20), vmem_cap))
        kernel = functools.partial(_tiled_kernel, hw=HW, t_hw=t_hw)
        out = pl.pallas_call(
            kernel,
            out_shape=jax.ShapeDtypeStruct((N, C, 1), jnp.float32),
            grid_spec=pltpu.PrefetchScalarGridSpec(
                num_scalar_prefetch=0,
                grid=(N, num_k),
                in_specs=[
                    pl.BlockSpec((1, C, t_hw), lambda n, k: (n, 0, k)),
                    pl.BlockSpec((Cr, C), lambda n, k: (0, 0)),
                    pl.BlockSpec((C, Cr), lambda n, k: (0, 0)),
                ],
                out_specs=pl.BlockSpec((1, C, 1), lambda n, k: (n, 0, 0)),
                scratch_shapes=[
                    pltpu.VMEM((C, _LANE), jnp.float32),   # lane-partial running sum
                    pltpu.VMEM((C, _LANE), jnp.float32),   # lane-partial running max
                ],
            ),
            compiler_params=pltpu.CompilerParams(
                dimension_semantics=("parallel", "arbitrary"),
                vmem_limit_bytes=vmem_limit,
            ),
            cost_estimate=cost,
        )(xf, w1f, w2f)

    return out.reshape(N, C, 1, 1).astype(x.dtype)


def channel_attention_ref(x, w1, w2):
    """Pure-JAX reference matching the PyTorch module."""
    N, C, H, W = x.shape
    xf = x.reshape(N, C, H * W).astype(jnp.float32)
    avg = jnp.mean(xf, axis=-1)            # (N, C)
    mx = jnp.max(xf, axis=-1)              # (N, C)

    def fc(p):
        return jnp.maximum(p @ w1.T, 0.0) @ w2.T

    out = jax.nn.sigmoid(fc(avg) + fc(mx))
    return out.reshape(N, C, 1, 1)


if __name__ == "__main__":
    key = jax.random.PRNGKey(0)
    k_x, k_x2, k_w1, k_w2 = jax.random.split(key, 4)

    # Module config: in_channel=32, reduction=16 -> hidden = 2.
    N, C, reduction = 2, 32, 16
    Cr = C // reduction

    # Conv1x1 weights with trivial spatial dims squeezed:
    #   conv1.weight (Cr, C, 1, 1) -> (Cr, C);  conv2.weight (C, Cr, 1, 1) -> (C, Cr)
    w1 = jax.random.normal(k_w1, (Cr, C), dtype=jnp.float32) * (1.0 / C ** 0.5)
    w2 = jax.random.normal(k_w2, (C, Cr), dtype=jnp.float32) * (1.0 / max(Cr, 1) ** 0.5)

    # (1) H=W=20 -> HW=400: auto path (single block) AND forced tiled path with a
    #     ragged last tile (400 = 3*128 + 16 -> exercises the masked tail chunk).
    x = jax.random.normal(k_x, (N, C, 20, 20), dtype=jnp.float32)
    ref = channel_attention_ref(x, w1, w2)
    out_auto = jax.block_until_ready(channel_attention(x, w1, w2))
    out_tiled = jax.block_until_ready(channel_attention(x, w1, w2, t_hw=128))
    assert out_auto.shape == (N, C, 1, 1), out_auto.shape
    assert bool(jnp.allclose(out_auto, ref, atol=1e-5, rtol=1e-5)), "single-block path mismatch"
    assert bool(jnp.allclose(out_tiled, ref, atol=1e-5, rtol=1e-5)), "tiled (ragged) path mismatch"

    # (2) H=W=16 -> HW=256: forced tiled path where HW % t_hw == 0 (mask-free tiles).
    x2 = jax.random.normal(k_x2, (N, C, 16, 16), dtype=jnp.float32)
    ref2 = channel_attention_ref(x2, w1, w2)
    out2 = jax.block_until_ready(channel_attention(x2, w1, w2, t_hw=128))
    assert bool(jnp.allclose(out2, ref2, atol=1e-5, rtol=1e-5)), "tiled (full-tile) path mismatch"

    print("KERNEL_OK")
</pallas_src>

<mosaic_0001>
module attributes {stable_mosaic.version = 11 : i64} {
  func.func @_single_block_kernel(%arg0: i32, %arg1: memref<1x32x400xf32, #tpu.memory_space<vmem>>, %arg2: memref<2x32xf32, #tpu.memory_space<vmem>>, %arg3: memref<32x2xf32, #tpu.memory_space<vmem>>, %arg4: memref<1x32x1xf32, #tpu.memory_space<vmem>>) attributes {dimension_semantics = [#tpu.dimension_semantics<parallel>], iteration_bounds = array<i64: 2>, scalar_prefetch = 0 : i64, scratch_operands = 0 : i64, tpu.core_type = #tpu.core_type<tc>, window_params = [{transform_indices = @transform_0, window_bounds = array<i64: 1, 32, 400>}, {pipeline_mode = #tpu.pipeline_mode<synchronous>, transform_indices = @transform_1, window_bounds = array<i64: 2, 32>}, {pipeline_mode = #tpu.pipeline_mode<synchronous>, transform_indices = @transform_2, window_bounds = array<i64: 32, 2>}, {transform_indices = @transform_3, window_bounds = array<i64: 1, 32, 1>}]} {
    %c0 = arith.constant 0 : index
    %c0_0 = arith.constant 0 : index
    %c0_1 = arith.constant 0 : index
    %0 = vector.load %arg1[%c0, %c0_0, %c0_1] : memref<1x32x400xf32, #tpu.memory_space<vmem>>, vector<1x32x400xf32>
    %1 = vector.shape_cast %0 : vector<1x32x400xf32> to vector<32x400xf32>
    %cst = arith.constant dense<0.000000e+00> : vector<32xf32>
    %2 = vector.multi_reduction <add>, %1, %cst [1] : vector<32x400xf32> to vector<32xf32>
    %3 = vector.shape_cast %2 : vector<32xf32> to vector<32x1xf32>
    %cst_2 = arith.constant 2.500000e-03 : f32
    %4 = vector.broadcast %cst_2 : f32 to vector<32x1xf32>
    %5 = arith.mulf %3, %4 : vector<32x1xf32>
    %cst_3 = arith.constant dense<0xFF800000> : vector<32xf32>
    %6 = vector.multi_reduction <maximumf>, %1, %cst_3 [1] : vector<32x400xf32> to vector<32xf32>
    %7 = vector.shape_cast %6 : vector<32xf32> to vector<32x1xf32>
    %c0_4 = arith.constant 0 : index
    %c0_5 = arith.constant 0 : index
    %8 = vector.load %arg2[%c0_4, %c0_5] : memref<2x32xf32, #tpu.memory_space<vmem>>, vector<2x32xf32>
    %c0_6 = arith.constant 0 : index
    %c0_7 = arith.constant 0 : index
    %9 = vector.load %arg3[%c0_6, %c0_7] : memref<32x2xf32, #tpu.memory_space<vmem>>, vector<32x2xf32>
    %cst_8 = arith.constant dense<0.000000e+00> : vector<2x1xf32>
    %10 = tpu.matmul %8, %5, %cst_8 {dimension_numbers = #tpu.dot_dimension_numbers<[1], [0], [0], [1], [0, 0, 1, 1], [], []>} : vector<2x32xf32>, vector<32x1xf32>, vector<2x1xf32> -> vector<2x1xf32>
    %cst_9 = arith.constant 0.000000e+00 : f32
    %11 = vector.broadcast %cst_9 : f32 to vector<2x1xf32>
    %12 = arith.maximumf %10, %11 : vector<2x1xf32>
    %cst_10 = arith.constant dense<0.000000e+00> : vector<2x1xf32>
    %13 = tpu.matmul %8, %7, %cst_10 {dimension_numbers = #tpu.dot_dimension_numbers<[1], [0], [0], [1], [0, 0, 1, 1], [], []>} : vector<2x32xf32>, vector<32x1xf32>, vector<2x1xf32> -> vector<2x1xf32>
    %cst_11 = arith.constant 0.000000e+00 : f32
    %14 = vector.broadcast %cst_11 : f32 to vector<2x1xf32>
    %15 = arith.maximumf %13, %14 : vector<2x1xf32>
    %16 = arith.addf %12, %15 : vector<2x1xf32>
    %cst_12 = arith.constant dense<0.000000e+00> : vector<32x1xf32>
    %17 = tpu.matmul %9, %16, %cst_12 {dimension_numbers = #tpu.dot_dimension_numbers<[1], [0], [0], [1], [0, 0, 1, 1], [], []>} : vector<32x2xf32>, vector<2x1xf32>, vector<32x1xf32> -> vector<32x1xf32>
    %18 = arith.negf %17 : vector<32x1xf32>
    %19 = math.exp %18 : vector<32x1xf32>
    %cst_13 = arith.constant 1.000000e+00 : f32
    %20 = vector.broadcast %cst_13 : f32 to vector<32x1xf32>
    %21 = arith.addf %20, %19 : vector<32x1xf32>
    %22 = arith.divf %20, %21 : vector<32x1xf32>
    %23 = vector.shape_cast %22 : vector<32x1xf32> to vector<1x32x1xf32>
    %c0_14 = arith.constant 0 : index
    %c0_15 = arith.constant 0 : index
    %c0_16 = arith.constant 0 : index
    %24 = vector.load %arg4[%c0_14, %c0_15, %c0_16] : memref<1x32x1xf32, #tpu.memory_space<vmem>>, vector<1x32x1xf32>
    tpu.vector_store %arg4[%c0_14, %c0_15, %c0_16], %23 {strides = array<i32>} : memref<1x32x1xf32, #tpu.memory_space<vmem>>, vector<1x32x1xf32>,
    return
  }
  func.func @transform_0(%arg0: i32) -> (i32, i32, i32) {
    %c0_i32 = arith.constant 0 : i32
    %c0_i32_0 = arith.constant 0 : i32
    %c0_i32_1 = arith.constant 0 : i32
    return %arg0, %c0_i32, %c0_i32_0 : i32, i32, i32
  }
  func.func @transform_1(%arg0: i32) -> (i32, i32) {
    %c0_i32 = arith.constant 0 : i32
    %c0_i32_0 = arith.constant 0 : i32
    %c0_i32_1 = arith.constant 0 : i32
    return %c0_i32, %c0_i32_0 : i32, i32
  }
  func.func @transform_2(%arg0: i32) -> (i32, i32) {
    %c0_i32 = arith.constant 0 : i32
    %c0_i32_0 = arith.constant 0 : i32
    %c0_i32_1 = arith.constant 0 : i32
    return %c0_i32, %c0_i32_0 : i32, i32
  }
  func.func @transform_3(%arg0: i32) -> (i32, i32, i32) {
    %c0_i32 = arith.constant 0 : i32
    %c0_i32_0 = arith.constant 0 : i32
    %c0_i32_1 = arith.constant 0 : i32
    return %arg0, %c0_i32, %c0_i32_0 : i32, i32, i32
  }
}

</mosaic_0001>

<llo_original>
// kernel: tpu_custom_call.1
$region0: #{tpu_custom_call.1}
  #allocation0 [shape = 'u32[]', space=smem, size = 0x4, offset = 0x4, fixed_abs, tag = 'smem constant byte address 0x4 - core index']
  #allocation1 [shape = 'u32[144,128]{1,0:T(1,128)}', space=vmem, size = 0x12000, scoped, tag = 'internal scratch']
  %s0 = inlined_call_operand.hbm [shape: f32[2,32,400], index: 0, kind: input, shape index: {}]
  %s1 = inlined_call_operand.vmem [shape: f32[2,32], index: 1, kind: input, shape index: {}]
  %s2 = inlined_call_operand.vmem [shape: f32[32,2], index: 2, kind: input, shape index: {}]
  %s3 = inlined_call_operand.vmem [shape: f32[2,32,1], index: 3, kind: output, shape index: {}]
  %s4 = sld [smem:[#allocation0]]
  $region49: #{tpu_custom_call.1} parent=0
    _
  %s6 = ssub.s32 1, %s4
  %s7 = scalar_select 0, %s6, %s4
  $region1: #{tpu_custom_call.1} parent=0
    #allocation2 [shape = 'u8[131072]{0}', space=vmem, size = 0x20000, scoped, tag = 'input window, operand 0']
    #allocation3 [shape = 's32[2]{0}', space=sflag, size = 0x8, scoped, tag = 'scoped memory for tpu_custom_call.1']
    %8 = vsyncpa [#allocation3], 0
    %s9 = scalar_lea.sflag [#allocation3], 1
    %10 = vsyncpa %s9, 0
    loop: start=0, step=1, limit=4
    $region2: #{tpu_custom_call.1} parent=1 // loop_pre_header
      _
    $region3: #{tpu_custom_call.1} parent=1 // loop_header
      %s12 = sphi 0, %s16
      %p13 = scmp.ge.s32.totalorder %s12, 4
      %s22 = sphi 0, %s24
      %s25 = sphi 0, %s22
      %s26 = sphi 0, %s25
      %s42 = sphi 0, %s26
      %s46 = sphi 0, %s46
      %s48 = sphi 0, %s46
      %s49 = sphi 0, %s48
      %s63 = sphi 0, %s49
      %s67 = sphi 0, %s67
      %s69 = sphi 0, %s67
      %s70 = sphi 0, %s69
      %s84 = sphi 0, %s70
      %s90 = sphi 0, %s92
      %s93 = sphi 0, %s90
      %s94 = sphi 0, %s93
      %s110 = sphi 0, %s94
    $region4: #{tpu_custom_call.1} parent=1 // loop_header_branch
      %15 = sbr.rel (%p13) target = $region8
    $region5: #{tpu_custom_call.1} parent=1 // loop_body
      %s17 = ssub.s32 %s12, 1
      %s18 = ssub.s32 %s12, 2
      %s19 = sadd.s32 %s12, 1
      %s20 = ssub.s32 %s12, %s19
      %p21 = scmp.eq.s32.totalorder %s20, 0
      %s23 = sadd.s32 %s22, 1
      %s24 = scalar_select %p21, %s22, %s23
      %p27 = pneg %p21
      %p28 = scmp.eq.s32.totalorder %s12, 1
      %p29 = por %p27, %p28
      %p30 = scmp.ne.s32.totalorder %s22, %s25
      %p31 = scmp.eq.s32.totalorder %s12, 0
      %p32 = por %p30, %p31
      %p33 = scmp.ne.s32.totalorder %s22, %s25
      %p34 = scmp.eq.s32.totalorder %s17, 1
      %p35 = por %p33, %p34
      %p36 = scmp.ne.s32.totalorder %s25, %s26
      %p37 = scmp.eq.s32.totalorder %s17, 0
      %p38 = por %p36, %p37
      %p39 = scmp.ne.s32.totalorder %s25, %s26
      %p40 = scmp.eq.s32.totalorder %s18, 1
      %p41 = por %p39, %p40
      %p43 = scmp.ne.s32.totalorder %s26, %s42
      %p44 = scmp.eq.s32.totalorder %s18, 0
      %p45 = por %p43, %p44
      %s47 = sadd.s32 %s46, 1
      %p50 = scmp.eq.s32.totalorder %s12, 1
      %p51 = scmp.ne.s32.totalorder %s46, %s48
      %p52 = scmp.eq.s32.totalorder %s12, 0
      %p53 = por %p51, %p52
      %p54 = scmp.ne.s32.totalorder %s46, %s48
      %p55 = scmp.eq.s32.totalorder %s17, 1
      %p56 = por %p54, %p55
      %p57 = scmp.ne.s32.totalorder %s48, %s49
      %p58 = scmp.eq.s32.totalorder %s17, 0
      %p59 = por %p57, %p58
      %p60 = scmp.ne.s32.totalorder %s48, %s49
      %p61 = scmp.eq.s32.totalorder %s18, 1
      %p62 = por %p60, %p61
      %p64 = scmp.ne.s32.totalorder %s49, %s63
      %p65 = scmp.eq.s32.totalorder %s18, 0
      %p66 = por %p64, %p65
      %s68 = sadd.s32 %s67, 1
      %p71 = scmp.eq.s32.totalorder %s12, 1
      %p72 = scmp.ne.s32.totalorder %s67, %s69
      %p73 = scmp.eq.s32.totalorder %s12, 0
      %p74 = por %p72, %p73
      %p75 = scmp.ne.s32.totalorder %s67, %s69
      %p76 = scmp.eq.s32.totalorder %s17, 1
      %p77 = por %p75, %p76
      %p78 = scmp.ne.s32.totalorder %s69, %s70
      %p79 = scmp.eq.s32.totalorder %s17, 0
      %p80 = por %p78, %p79
      %p81 = scmp.ne.s32.totalorder %s69, %s70
      %p82 = scmp.eq.s32.totalorder %s18, 1
      %p83 = por %p81, %p82
      %p85 = scmp.ne.s32.totalorder %s70, %s84
      %p86 = scmp.eq.s32.totalorder %s18, 0
      %p87 = por %p85, %p86
      %s88 = ssub.s32 %s12, %s19
      %p89 = scmp.eq.s32.totalorder %s88, 0
      %s91 = sadd.s32 %s90, 1
      %s92 = scalar_select %p89, %s90, %s91
      %p95 = pneg %p89
      %p96 = scmp.eq.s32.totalorder %s12, 1
      %p97 = por %p95, %p96
      %p98 = scmp.ne.s32.totalorder %s90, %s93
      %p99 = scmp.eq.s32.totalorder %s12, 0
      %p100 = por %p98, %p99
      %p101 = scmp.ne.s32.totalorder %s90, %s93
      %p102 = scmp.eq.s32.totalorder %s17, 1
      %p103 = por %p101, %p102
      %p104 = scmp.ne.s32.totalorder %s93, %s94
      %p105 = scmp.eq.s32.totalorder %s17, 0
      %p106 = por %p104, %p105
      %p107 = scmp.ne.s32.totalorder %s93, %s94
      %p108 = scmp.eq.s32.totalorder %s18, 1
      %p109 = por %p107, %p108
      %p111 = scmp.ne.s32.totalorder %s94, %s110
      %p112 = scmp.eq.s32.totalorder %s18, 0
      %p113 = por %p111, %p112
      %p114 = scmp.le.s32.totalorder 1, %s12
      %p115 = scmp.lt.s32.totalorder %s12, 3
      %p116 = pnand %p114, %p115
      %p117 = pneg %p116
      // Predicated region
      $region9: #{tpu_custom_call.1} parent=5 // pred_check
        _
      $region10: #{tpu_custom_call.1} parent=5 // pred_check_branch
        %119 = sbr.rel (%p116) target = $region12
      $region11: #{tpu_custom_call.1} parent=5 // pred_region
        %s120 = ssub.s32 %s12, 1
        // Predicated region
        $region13: #{tpu_custom_call.1} parent=11 // pred_check
          %p121 = pneg %p59
        $region14: #{tpu_custom_call.1} parent=11 // pred_check_branch
          %123 = sbr.rel (%p121) target = $region16
        $region15: #{tpu_custom_call.1} parent=11 // pred_region
          _
        $region16: #{tpu_custom_call.1} parent=11 // pred_fallthru
          _
        // Predicated region
        $region17: #{tpu_custom_call.1} parent=11 // pred_check
          %p124 = pneg %p80
        $region18: #{tpu_custom_call.1} parent=11 // pred_check_branch
          %126 = sbr.rel (%p124) target = $region20
        $region19: #{tpu_custom_call.1} parent=11 // pred_region
          _
        $region20: #{tpu_custom_call.1} parent=11 // pred_fallthru
          _
      $region12: #{tpu_custom_call.1} parent=5 // pred_fallthru
        _
      %p127 = scmp.lt.s32.totalorder %s12, 2
      // Predicated region
      $region21: #{tpu_custom_call.1} parent=5 // pred_check
        %p128 = pneg %p127
      $region22: #{tpu_custom_call.1} parent=5 // pred_check_branch
        %130 = sbr.rel (%p128) target = $region24
      $region23: #{tpu_custom_call.1} parent=5 // pred_region
        // Predicated region
        $region25: #{tpu_custom_call.1} parent=23 // pred_check
          %p131 = pneg %p32
        $region26: #{tpu_custom_call.1} parent=23 // pred_check_branch
          %133 = sbr.rel (%p131) target = $region28
        $region27: #{tpu_custom_call.1} parent=23 // pred_region
          %s134 = sand.u32 %s22, 1
          %s135 = scalar_lea.sflag [#allocation3], %s134
          %s136 = sand.u32 %s22, 1
          %s137 = smul.addr %s136, 128
          %s138 = scalar_lea.vmem [#allocation2], %s137
          %s140 = ssub.s32 2048, 2048
          %141 = vsyncadd %s135, %s140
          %s142 = smul.addr %s12, 16
          %s143 = smul.addr %s142, 128
          %s144 = scalar_lea.hbm %s0, %s143
          %s145 = sshll.u32 %s138, 4
          %s146 = int_to_ptr.vmem [resolvable:$true] %s145
          %151 = dma.hbm_to_vmem [thread:$0]  %s144, 2048, %s146, %s135, 512, 512, 32
        $region28: #{tpu_custom_call.1} parent=23 // pred_fallthru
          _
      $region24: #{tpu_custom_call.1} parent=5 // pred_fallthru
        _
      %p152 = scmp.le.s32.totalorder 1, %s12
      %p153 = scmp.lt.s32.totalorder %s12, 3
      %p154 = pnand %p152, %p153
      %p155 = pneg %p154
      // Predicated region
      $region29: #{tpu_custom_call.1} parent=5 // pred_check
        _
      $region30: #{tpu_custom_call.1} parent=5 // pred_check_branch
        %157 = sbr.rel (%p154) target = $region32
      $region31: #{tpu_custom_call.1} parent=5 // pred_region
        %s158 = ssub.s32 %s12, 1
        %s159 = sand.u32 %s25, 1
        %s160 = scalar_lea.sflag [#allocation3], %s159
        %s161 = sand.u32 %s25, 1
        %s162 = smul.addr %s161, 128
        %s163 = scalar_lea.vmem [#allocation2], %s162
        // Predicated region
        $region33: #{tpu_custom_call.1} parent=31 // pred_check
          %p164 = pneg %p38
        $region34: #{tpu_custom_call.1} parent=31 // pred_check_branch
          %166 = sbr.rel (%p164) target = $region36
        $region35: #{tpu_custom_call.1} parent=31 // pred_region
          %167 = dma.done %s160, 2048
        $region36: #{tpu_custom_call.1} parent=31 // pred_fallthru
          _
        %s168 = sand.u32 %s25, 1
        %s169 = scalar_lea.sflag [#allocation3], %s168
        %s170 = sand.u32 %s25, 1
        %s171 = smul.addr %s170, 128
        %s172 = scalar_lea.vmem [#allocation2], %s171
        %p173 = pneg %p38
        %p174 = pneg %p35
        %p175 = pneg %p59
        %p176 = pneg %p56
        %p177 = pneg %p80
        %p178 = pneg %p77
        %p179 = pneg %p106
        %p180 = pneg %p103
        %p181 = scmp.lt.s32.totalorder %s17, 1
        %s182 = scalar_select %p181, %s17, 1
        %s183 = smul.addr %s182, 4
        %s184 = smul.addr %s183, 8
        %s185 = scalar_lea.vmem %s3, %s184
        %p186 = scmp.lt.s32.totalorder %s17, 1
        %s187 = scalar_select %p186, %s17, 1
        %s188 = smul.addr %s187, 4
        %s189 = smul.addr %s188, 8
        %s190 = scalar_lea.vmem %s3, %s189
        %v191 = vld [vmem:[%s163] sm:$0xff]
        %v192 = vld [vmem:[%s163 + $0x8] sm:$0xff]
        %v193 = vld [vmem:[%s163 + $0x10] sm:$0xff]
        %v194 = vld [vmem:[%s163 + $0x18] sm:$0xff]
        %v195 = vld [vmem:[%s163 + $0x20] sm:$0xff]
        %v196 = vld [vmem:[%s163 + $0x28] sm:$0xff]
        %v197 = vld [vmem:[%s163 + $0x30] sm:$0xff]
        %v198 = vld [vmem:[%s163 + $0x38] sm:$0xff]
        %v199 = vld [vmem:[%s163 + $0x40] sm:$0xff]
        %v200 = vld [vmem:[%s163 + $0x48] sm:$0xff]
        %v201 = vld [vmem:[%s163 + $0x50] sm:$0xff]
        %v202 = vld [vmem:[%s163 + $0x58] sm:$0xff]
        %v203 = vld [vmem:[%s163 + $0x60] sm:$0xff]
        %v204 = vld [vmem:[%s163 + $0x68] sm:$0xff]
        %v205 = vld [vmem:[%s163 + $0x70] sm:$0xff]
        %v206 = vld [vmem:[%s163 + $0x78] sm:$0xff]
        %v207 = vadd.f32 %v191, %v192
        %v208 = vadd.f32 %v207, %v193
        %vm209 = vcmask 130048
        %v210 = vsel %vm209, %v194, 0.0
        %v211 = vadd.f32 %v208, %v210
        %212 = vadd.xlane.f32.xlu0 %v211
        %v213 = vpop.xlane.xlu0 %212
        %v214 = vadd.f32 %v195, %v196
        %v215 = vadd.f32 %v214, %v197
        %v216 = vsel %vm209, %v198, 0.0
        %v217 = vadd.f32 %v215, %v216
        %218 = vadd.xlane.f32.xlu0 %v217
        %v219 = vpop.xlane.xlu0 %218
        %v220 = vadd.f32 %v199, %v200
        %v221 = vadd.f32 %v220, %v201
        %v222 = vsel %vm209, %v202, 0.0
        %v223 = vadd.f32 %v221, %v222
        %224 = vadd.xlane.f32.xlu0 %v223
        %v225 = vpop.xlane.xlu0 %224
        %v226 = vadd.f32 %v203, %v204
        %v227 = vadd.f32 %v226, %v205
        %v228 = vsel %vm209, %v206, 0.0
        %v229 = vadd.f32 %v227, %v228
        %230 = vadd.xlane.f32.xlu0 %v229
        %v231 = vpop.xlane.xlu0 %230
        %v232 = vmul.f32 %v213, 0.0025
        %v233 = vmul.f32 %v219, 0.0025
        %v234 = vmul.f32 %v225, 0.0025
        %v235 = vmul.f32 %v231, 0.0025
        %v236 = vmax.f32 %v191, %v192
        %v237 = vmax.f32 %v236, %v193
        %v238 = vsel %vm209, %v194, -inf
        %v239 = vmax.f32 %v237, %v238
        %240 = vmax.xlane.f32.xlu0 %v239
        %v241 = vpop.xlane.xlu0 %240
        %v242 = vmax.f32 %v195, %v196
        %v243 = vmax.f32 %v242, %v197
        %v244 = vsel %vm209, %v198, -inf
        %v245 = vmax.f32 %v243, %v244
        %246 = vmax.xlane.f32.xlu0 %v245
        %v247 = vpop.xlane.xlu0 %246
        %v248 = vmax.f32 %v199, %v200
        %v249 = vmax.f32 %v248, %v201
        %v250 = vsel %vm209, %v202, -inf
        %v251 = vmax.f32 %v249, %v250
        %252 = vmax.xlane.f32.xlu0 %v251
        %v253 = vpop.xlane.xlu0 %252
        %v254 = vmax.f32 %v203, %v204
        %v255 = vmax.f32 %v254, %v205
        %v256 = vsel %vm209, %v206, -inf
        %v257 = vmax.f32 %v255, %v256
        %258 = vmax.xlane.f32.xlu0 %v257
        %v259 = vpop.xlane.xlu0 %258
        %v260 = vld [vmem:[%s1] sm:$0x3]
        %v261 = vld [vmem:[%s2] sm:$0xff]
        %v262 = vld [vmem:[%s2 + $0x8] sm:$0xff]
        %v263 = vld [vmem:[%s2 + $0x10] sm:$0xff]
        %v264 = vld [vmem:[%s2 + $0x18] sm:$0xff]
        %vm265 = vcmask 261120
        %v267 = vsel %vm265, %v260, 0
        %269 = vmatprep.subr.mxu0 0.0
        %270 = vmatpush1.msra.mxu0 %v232
        %271 = vmatprep.subr.mxu0 0.0
        %272 = vmatpush1.msra.mxu0 %v233
        %273 = vmatprep.subr.mxu0 0.0
        %274 = vmatpush1.msra.mxu0 %v234
        %275 = vmatprep.subr.mxu0 0.0
        %276 = vmatpush1.msra.mxu0 %v235
        %277 = vmatprep.subr.mxu0 0.0
        %278 = vmatpush1.msra.mxu0 0.0
        %279 = vmatprep.subr.mxu0 0.0
        %280 = vmatpush1.msra.mxu0 0.0
        %281 = vmatprep.subr.mxu0 0.0
        %282 = vmatpush1.msra.mxu0 0.0
        %283 = vmatprep.subr.mxu0 0.0
        %284 = vmatpush1.msra.mxu0 0.0
        %285 = vmatprep.subr.mxu0 0.0
        %286 = vmatpush1.msra.mxu0 0.0
        %287 = vmatprep.subr.mxu0 0.0
        %288 = vmatpush1.msra.mxu0 0.0
        %289 = vmatprep.subr.mxu0 0.0
        %290 = vmatpush1.msra.mxu0 0.0
        %291 = vmatprep.subr.mxu0 0.0
        %292 = vmatpush1.msra.mxu0 0.0
        %293 = vmatprep.subr.mxu0 0.0
        %294 = vmatpush1.msra.mxu0 0.0
        %295 = vmatprep.subr.mxu0 0.0
        %296 = vmatpush1.msra.mxu0 0.0
        %297 = vmatprep.subr.mxu0 0.0
        %298 = vmatpush1.msra.mxu0 0.0
        %299 = vmatprep.subr.mxu0 0.0
        %300 = vmatpush1.msra.mxu0 0.0
        %301 = vmatprep.subr.mxu0 0.0
        %302 = vmatpush1.msra.mxu0 0.0
        %303 = vmatprep.subr.mxu0 0.0
        %304 = vmatpush1.msra.mxu0 0.0
        %305 = vmatprep.subr.mxu0 0.0
        %306 = vmatpush1.msra.mxu0 0.0
        %307 = vmatprep.subr.mxu0 0.0
        %308 = vmatpush1.msra.mxu0 0.0
        %309 = vmatprep.subr.mxu0 0.0
        %310 = vmatpush1.msra.mxu0 0.0
        %311 = vmatprep.subr.mxu0 0.0
        %312 = vmatpush1.msra.mxu0 0.0
        %313 = vmatprep.subr.mxu0 0.0
        %314 = vmatpush1.msra.mxu0 0.0
        %315 = vmatprep.subr.mxu0 0.0
        %316 = vmatpush1.msra.mxu0 0.0
        %317 = vmatprep.subr.mxu0 0.0
        %318 = vmatpush1.msra.mxu0 0.0
        %319 = vmatprep.subr.mxu0 0.0
        %320 = vmatpush1.msra.mxu0 0.0
        %321 = vmatprep.subr.mxu0 0.0
        %322 = vmatpush1.msra.mxu0 0.0
        %323 = vmatprep.subr.mxu0 0.0
        %324 = vmatpush1.msra.mxu0 0.0
        %325 = vmatprep.subr.mxu0 0.0
        %326 = vmatpush1.msra.mxu0 0.0
        %327 = vmatprep.subr.mxu0 0.0
        %328 = vmatpush1.msra.mxu0 0.0
        %329 = vmatprep.subr.mxu0 0.0
        %330 = vmatpush1.msra.mxu0 0.0
        %331 = vmatprep.subr.mxu0 0.0
        %332 = vmatpush1.msra.mxu0 0.0
        %333 = vmatprep.mubr.f32.mxu0 0.0
        %334 = vmatmul.mubr.f32.gmra.mrb[0].mxu0 %v267
        %v335 = vpop.f32.mrb[0].mxu0
        %v336 = vadd.f32 0.0, %v335
        %v337 = vpop.f32.mrb[0].mxu0
        %338 = vdwg.mxu0
        %v339 = vmax.f32 %v336, 0.0
        %340 = vmatprep.subr.mxu0 0.0
        %341 = vmatpush1.msra.mxu0 %v241
        %342 = vmatprep.subr.mxu0 0.0
        %343 = vmatpush1.msra.mxu0 %v247
        %344 = vmatprep.subr.mxu0 0.0
        %345 = vmatpush1.msra.mxu0 %v253
        %346 = vmatprep.subr.mxu0 0.0
        %347 = vmatpush1.msra.mxu0 %v259
        %348 = vmatprep.subr.mxu0 0.0
        %349 = vmatpush1.msra.mxu0 0.0
        %350 = vmatprep.subr.mxu0 0.0
        %351 = vmatpush1.msra.mxu0 0.0
        %352 = vmatprep.subr.mxu0 0.0
        %353 = vmatpush1.msra.mxu0 0.0
        %354 = vmatprep.subr.mxu0 0.0
        %355 = vmatpush1.msra.mxu0 0.0
        %356 = vmatprep.subr.mxu0 0.0
        %357 = vmatpush1.msra.mxu0 0.0
        %358 = vmatprep.subr.mxu0 0.0
        %359 = vmatpush1.msra.mxu0 0.0
        %360 = vmatprep.subr.mxu0 0.0
        %361 = vmatpush1.msra.mxu0 0.0
        %362 = vmatprep.subr.mxu0 0.0
        %363 = vmatpush1.msra.mxu0 0.0
        %364 = vmatprep.subr.mxu0 0.0
        %365 = vmatpush1.msra.mxu0 0.0
        %366 = vmatprep.subr.mxu0 0.0
        %367 = vmatpush1.msra.mxu0 0.0
        %368 = vmatprep.subr.mxu0 0.0
        %369 = vmatpush1.msra.mxu0 0.0
        %370 = vmatprep.subr.mxu0 0.0
        %371 = vmatpush1.msra.mxu0 0.0
        %372 = vmatprep.subr.mxu0 0.0
        %373 = vmatpush1.msra.mxu0 0.0
        %374 = vmatprep.subr.mxu0 0.0
        %375 = vmatpush1.msra.mxu0 0.0
        %376 = vmatprep.subr.mxu0 0.0
        %377 = vmatpush1.msra.mxu0 0.0
        %378 = vmatprep.subr.mxu0 0.0
        %379 = vmatpush1.msra.mxu0 0.0
        %380 = vmatprep.subr.mxu0 0.0
        %381 = vmatpush1.msra.mxu0 0.0
        %382 = vmatprep.subr.mxu0 0.0
        %383 = vmatpush1.msra.mxu0 0.0
        %384 = vmatprep.subr.mxu0 0.0
        %385 = vmatpush1.msra.mxu0 0.0
        %386 = vmatprep.subr.mxu0 0.0
        %387 = vmatpush1.msra.mxu0 0.0
        %388 = vmatprep.subr.mxu0 0.0
        %389 = vmatpush1.msra.mxu0 0.0
        %390 = vmatprep.subr.mxu0 0.0
        %391 = vmatpush1.msra.mxu0 0.0
        %392 = vmatprep.subr.mxu0 0.0
        %393 = vmatpush1.msra.mxu0 0.0
        %394 = vmatprep.subr.mxu0 0.0
        %395 = vmatpush1.msra.mxu0 0.0
        %396 = vmatprep.subr.mxu0 0.0
        %397 = vmatpush1.msra.mxu0 0.0
        %398 = vmatprep.subr.mxu0 0.0
        %399 = vmatpush1.msra.mxu0 0.0
        %400 = vmatprep.subr.mxu0 0.0
        %401 = vmatpush1.msra.mxu0 0.0
        %402 = vmatprep.subr.mxu0 0.0
        %403 = vmatpush1.msra.mxu0 0.0
        %404 = vmatprep.mubr.f32.mxu0 0.0
        %405 = vmatmul.mubr.f32.gmra.mrb[0].mxu0 %v267
        %v406 = vpop.f32.mrb[0].mxu0
        %v407 = vadd.f32 0.0, %v406
        %v408 = vpop.f32.mrb[0].mxu0
        %409 = vdwg.mxu0
        %v410 = vmax.f32 %v407, 0.0
        %v411 = vadd.f32 %v339, %v410
        %vm412 = vcmask 15360
        %v414 = vsel %vm412, %v261, 0
        %v417 = vsel %vm412, %v262, 0
        %v420 = vsel %vm412, %v263, 0
        %v423 = vsel %vm412, %v264, 0
        %vm425 = vcmask 1041408
        %v427 = vsel %vm425, %v411, 0
        %429 = vmatprep.subr.mxu0 0.0
        %430 = vmatpush1.msra.mxu0 %v427
        %431 = vmatprep.subr.mxu0 0.0
        %432 = vmatpush1.msra.mxu0 0.0
        %433 = vmatprep.subr.mxu0 0.0
        %434 = vmatpush1.msra.mxu0 0.0
        %435 = vmatprep.subr.mxu0 0.0
        %436 = vmatpush1.msra.mxu0 0.0
        %437 = vmatprep.subr.mxu0 0.0
        %438 = vmatpush1.msra.mxu0 0.0
        %439 = vmatprep.subr.mxu0 0.0
        %440 = vmatpush1.msra.mxu0 0.0
        %441 = vmatprep.subr.mxu0 0.0
        %442 = vmatpush1.msra.mxu0 0.0
        %443 = vmatprep.subr.mxu0 0.0
        %444 = vmatpush1.msra.mxu0 0.0
        %445 = vmatprep.subr.mxu0 0.0
        %446 = vmatpush1.msra.mxu0 0.0
        %447 = vmatprep.subr.mxu0 0.0
        %448 = vmatpush1.msra.mxu0 0.0
        %449 = vmatprep.subr.mxu0 0.0
        %450 = vmatpush1.msra.mxu0 0.0
        %451 = vmatprep.subr.mxu0 0.0
        %452 = vmatpush1.msra.mxu0 0.0
        %453 = vmatprep.subr.mxu0 0.0
        %454 = vmatpush1.msra.mxu0 0.0
        %455 = vmatprep.subr.mxu0 0.0
        %456 = vmatpush1.msra.mxu0 0.0
        %457 = vmatprep.subr.mxu0 0.0
        %458 = vmatpush1.msra.mxu0 0.0
        %459 = vmatprep.subr.mxu0 0.0
        %460 = vmatpush1.msra.mxu0 0.0
        %461 = vmatprep.subr.mxu0 0.0
        %462 = vmatpush1.msra.mxu0 0.0
        %463 = vmatprep.subr.mxu0 0.0
        %464 = vmatpush1.msra.mxu0 0.0
        %465 = vmatprep.subr.mxu0 0.0
        %466 = vmatpush1.msra.mxu0 0.0
        %467 = vmatprep.subr.mxu0 0.0
        %468 = vmatpush1.msra.mxu0 0.0
        %469 = vmatprep.subr.mxu0 0.0
        %470 = vmatpush1.msra.mxu0 0.0
        %471 = vmatprep.subr.mxu0 0.0
        %472 = vmatpush1.msra.mxu0 0.0
        %473 = vmatprep.subr.mxu0 0.0
        %474 = vmatpush1.msra.mxu0 0.0
        %475 = vmatprep.subr.mxu0 0.0
        %476 = vmatpush1.msra.mxu0 0.0
        %477 = vmatprep.subr.mxu0 0.0
        %478 = vmatpush1.msra.mxu0 0.0
        %479 = vmatprep.subr.mxu0 0.0
        %480 = vmatpush1.msra.mxu0 0.0
        %481 = vmatprep.subr.mxu0 0.0
        %482 = vmatpush1.msra.mxu0 0.0
        %483 = vmatprep.subr.mxu0 0.0
        %484 = vmatpush1.msra.mxu0 0.0
        %485 = vmatprep.subr.mxu0 0.0
        %486 = vmatpush1.msra.mxu0 0.0
        %487 = vmatprep.subr.mxu0 0.0
        %488 = vmatpush1.msra.mxu0 0.0
        %489 = vmatprep.subr.mxu0 0.0
        %490 = vmatpush1.msra.mxu0 0.0
        %491 = vmatprep.subr.mxu0 0.0
        %492 = vmatpush1.msra.mxu0 0.0
        %493 = vmatprep.mubr.f32.mxu0 0.0
        %494 = vmatmul.mubr.f32.gmra.mrb[0].mxu0 %v414
        %v495 = vpop.f32.mrb[0].mxu0
        %v496 = vadd.f32 0.0, %v495
        %v497 = vpop.f32.mrb[0].mxu0
        %498 = vmatprep.mubr.f32.mxu0 0.0
        %499 = vmatmul.mubr.f32.gmra.mrb[0].mxu0 %v417
        %v500 = vpop.f32.mrb[0].mxu0
        %v501 = vadd.f32 0.0, %v500
        %v502 = vpop.f32.mrb[0].mxu0
        %503 = vmatprep.mubr.f32.mxu0 0.0
        %504 = vmatmul.mubr.f32.gmra.mrb[0].mxu0 %v420
        %v505 = vpop.f32.mrb[0].mxu0
        %v506 = vadd.f32 0.0, %v505
        %v507 = vpop.f32.mrb[0].mxu0
        %508 = vmatprep.mubr.f32.mxu0 0.0
        %509 = vmatmul.mubr.f32.gmra.mrb[0].mxu0 %v423
        %v510 = vpop.f32.mrb[0].mxu0
        %v511 = vadd.f32 0.0, %v510
        %v512 = vpop.f32.mrb[0].mxu0
        %513 = vdwg.mxu0
        %v514 = vxor.u32 %v496, 2147483648
        %v515 = vxor.u32 %v501, 2147483648
        %v516 = vxor.u32 %v506, 2147483648
        %v517 = vxor.u32 %v511, 2147483648
        %v518 = vmul.f32 %v514, 1.442695
        %v519 = vpow.pop %v518
        %v520 = vmul.f32 %v515, 1.442695
        %v521 = vpow.pop %v520
        %v522 = vmul.f32 %v516, 1.442695
        %v523 = vpow.pop %v522
        %v524 = vmul.f32 %v517, 1.442695
        %v525 = vpow.pop %v524
        %v526 = vadd.f32 %v519, 1.0
        %v527 = vadd.f32 %v521, 1.0
        %v528 = vadd.f32 %v523, 1.0
        %v529 = vadd.f32 %v525, 1.0
        %v530 = vrcp.pop %v526
        %v531 = vmul.f32 1.0, %v530
        %v532 = vrcp.pop %v527
        %v533 = vmul.f32 1.0, %v532
        %v534 = vrcp.pop %v528
        %v535 = vmul.f32 1.0, %v534
        %v536 = vrcp.pop %v529
        %v537 = vmul.f32 1.0, %v536
        %vm538 = vcmask 7168
        %539 = vst.msk [vmem:[%s190] sm:$0xff] %vm538, %v531
        %540 = vst.msk [vmem:[%s190 + $0x8] sm:$0xff] %vm538, %v533
        %541 = vst.msk [vmem:[%s190 + $0x10] sm:$0xff] %vm538, %v535
        %542 = vst.msk [vmem:[%s190 + $0x18] sm:$0xff] %vm538, %v537
        %p543 = scmp.lt.s32.totalorder %s17, 1
        %s544 = scalar_select %p543, %s17, 1
        %s545 = smul.addr %s544, 4
        %s546 = smul.addr %s545, 8
        %s547 = scalar_lea.vmem %s3, %s546
        // Predicated region
        $region37: #{tpu_custom_call.1} parent=31 // pred_check
          %p548 = pneg %p103
        $region38: #{tpu_custom_call.1} parent=31 // pred_check_branch
          %550 = sbr.rel (%p548) target = $region40
        $region39: #{tpu_custom_call.1} parent=31 // pred_region
          _
        $region40: #{tpu_custom_call.1} parent=31 // pred_fallthru
          _
      $region32: #{tpu_custom_call.1} parent=5 // pred_fallthru
        _
      %p551 = scmp.le.s32.totalorder 2, %s12
      // Predicated region
      $region41: #{tpu_custom_call.1} parent=5 // pred_check
        %p552 = pneg %p551
      $region42: #{tpu_custom_call.1} parent=5 // pred_check_branch
        %554 = sbr.rel (%p552) target = $region44
      $region43: #{tpu_custom_call.1} parent=5 // pred_region
        %s555 = ssub.s32 %s12, 2
        // Predicated region
        $region45: #{tpu_custom_call.1} parent=43 // pred_check
          %p556 = pneg %p109
        $region46: #{tpu_custom_call.1} parent=43 // pred_check_branch
          %558 = sbr.rel (%p556) target = $region48
        $region47: #{tpu_custom_call.1} parent=43 // pred_region
          %p559 = scmp.lt.s32.totalorder %s18, 1
          %s560 = scalar_select %p559, %s18, 1
          %s561 = smul.addr %s560, 4
          %s562 = smul.addr %s561, 8
          %s563 = scalar_lea.vmem %s3, %s562
        $region48: #{tpu_custom_call.1} parent=43 // pred_fallthru
          _
      $region44: #{tpu_custom_call.1} parent=5 // pred_fallthru
        _
    $region6: #{tpu_custom_call.1} parent=1 // loop_footer
      %s16 = sadd.s32 1, %s12
    $region7: #{tpu_custom_call.1} parent=1 // loop_footer_branch
      %11 = sbr.rel target = $region3
    $region8: #{tpu_custom_call.1} parent=1 // loop_exit
      _
    %564 = vsyncpa [#allocation3], 1
    %s565 = scalar_lea.sflag [#allocation3], 1
    %566 = vsyncpa %s565, 1

</llo_original>
